<compile_context>
chip_gen: v7x
topology: tpu7x:2x2x1
jax: 0.10.0
libtpu: 0.0.40
codegen_flags: <defaults>
</compile_context>

<pallas_src>
import functools

import jax
import jax.numpy as jnp
from jax.experimental import pallas as pl
from jax.experimental.pallas import tpu as pltpu


def _round_up(x, m):
    return ((x + m - 1) // m) * m


def _focal_loss_kernel(x_ref, out_ref, *, num_classes, n_valid, steps_per_core,
                       alpha_vals, scalar_alpha, gamma):
    core = pl.program_id(0)     # parallel axis (megacore split on v7x)
    step = pl.program_id(1)     # reduction axis over lane tiles

    @pl.when(step == 0)
    def _init():
        out_ref[...] = jnp.zeros_like(out_ref)

    c = num_classes
    blk = x_ref[...]                                     # (rows, TN) one dense DMA
    logits = blk[0:c, :].astype(jnp.float32)             # (C, TN), samples on lanes
    raw = blk[c:c + 1, :]                                 # (1, TN) label bits
    if raw.dtype == jnp.float32:
        labels = pltpu.bitcast(raw, jnp.int32)
    else:                                                 # bf16 path: int16 bits
        labels = pltpu.bitcast(raw, jnp.int16).astype(jnp.int32)
    tn = logits.shape[1]

    # Numerically stable log-softmax over the class (sublane) axis.
    m = jnp.max(logits, axis=0, keepdims=True)            # (1, TN)
    z = logits - m                                        # (C, TN)
    logsumexp = jnp.log(jnp.sum(jnp.exp(z), axis=0, keepdims=True))

    # Gather z at the target class via a one-hot compare.
    class_idx = jax.lax.broadcasted_iota(jnp.int32, (c, tn), 0)
    onehot = class_idx == labels                           # (C, TN) bool
    z_t = jnp.sum(jnp.where(onehot, z, 0.0), axis=0, keepdims=True)
    logp_t = z_t - logsumexp                               # (1, TN)
    p_t = jnp.exp(logp_t)

    if scalar_alpha:
        # alpha[0]=a, alpha[1:]=1-a -> single compare + select.  Padded /
        # garbage lanes are removed by the validity mask below, not here.
        alpha_t = jnp.where(labels == 0, jnp.float32(alpha_vals[0]),
                            jnp.float32(alpha_vals[1]))
    else:
        alpha_col = jnp.asarray(alpha_vals, jnp.float32).reshape(c, 1)
        alpha_t = jnp.sum(jnp.where(onehot, alpha_col, 0.0), axis=0,
                          keepdims=True)

    # (1 - p_t) ** gamma: integer gamma lowered to explicit VPU multiplies.
    one_m = 1.0 - p_t
    if isinstance(gamma, int) and gamma >= 0:
        w = jnp.ones_like(one_m) if gamma == 0 else one_m
        for _ in range(int(gamma) - 1):
            w = w * one_m
    else:
        # TODO(synk): float gamma falls back to pow (EUP exp+log); int preferred.
        w = one_m ** gamma

    focal = alpha_t * (w * (-logp_t))                      # (1, TN)

    # Mask tail columns and duplicated (clamped) tiles with the true N.
    tile_idx = core * steps_per_core + step                # logical (unclamped)
    col = tile_idx * tn + jax.lax.broadcasted_iota(jnp.int32, (1, tn), 1)
    focal = jnp.where(col < n_valid, focal, 0.0)

    # Lane-reduce the per-step partial (XLU) and accumulate it at element
    # [0, 0] of the resident per-core output block (full-block add, no masked
    # sub-stores, no big VMEM accumulator).
    partial = jnp.sum(focal, axis=1, keepdims=True)        # (1, 1)
    ri = jax.lax.broadcasted_iota(jnp.int32, out_ref.shape, 0)
    ci = jax.lax.broadcasted_iota(jnp.int32, out_ref.shape, 1)
    out_ref[...] += jnp.where((ri == 0) & (ci == 0), partial, 0.0)


def focal_loss(preds, labels, *, alpha=0.25, gamma=2, num_classes=5,
               size_average=True, max_tile_n=65536):
    """JAX/Pallas equivalent of Focal_Loss.forward(preds, labels).

    labels must hold class ids in [0, num_classes); PyTorch's gather would
    raise on anything else, here out-of-range ids give undefined per-sample
    contributions.
    """
    preds = preds.reshape(-1, preds.shape[-1])
    if preds.dtype not in (jnp.float32, jnp.bfloat16):
        preds = preds.astype(jnp.float32)
    n, c = preds.shape
    assert c == num_classes

    # alpha vector as in Focal_Loss.__init__ (static config -> kernel constants).
    if isinstance(alpha, (list, tuple)):
        assert len(alpha) == num_classes
        alpha_vals = tuple(float(a) for a in alpha)
        scalar_alpha = False
    else:
        assert alpha < 1
        alpha_vals = (float(alpha), float(1.0 - alpha))
        scalar_alpha = True

    dt = preds.dtype
    label_int = jnp.int32 if dt == jnp.float32 else jnp.int16

    LANE = 128
    rows = _round_up(c + 1, 8)             # C logit rows + 1 label row, 8-padded
    n_pad = _round_up(n, LANE)
    tn = min(n_pad, max_tile_n)            # lane tile (multiple of 128)
    grid_n = pl.cdiv(n_pad, tn)
    num_cores = 2 if grid_n >= 2 else 1    # leading parallel axis (v7x megacore)
    steps = pl.cdiv(grid_n, num_cores)

    # One fused producer: transpose + bit-cast label row + sublane pad rows.
    label_bits = jax.lax.bitcast_convert_type(
        labels.reshape(1, n).astype(label_int), dt)
    packed = jnp.concatenate(
        [jnp.transpose(preds), label_bits,
         jnp.zeros((rows - c - 1, n), dt)], axis=0)        # (rows, N)
    if n_pad != n:                          # <=127 extra columns, only if needed
        packed = jnp.pad(packed, ((0, 0), (0, n_pad - n)))

    kernel = functools.partial(
        _focal_loss_kernel, num_classes=c, n_valid=n, steps_per_core=steps,
        alpha_vals=alpha_vals, scalar_alpha=scalar_alpha, gamma=gamma)

    partials = pl.pallas_call(
        kernel,
        out_shape=jax.ShapeDtypeStruct((8, 128 * num_cores), jnp.float32),
        grid=(num_cores, steps),
        in_specs=[pl.BlockSpec(
            (rows, tn),
            # clamp so remainder steps of the last core re-read a valid tile
            # (their contribution is masked to zero in-kernel).
            lambda i, j: (0, jnp.minimum(i * steps + j, grid_n - 1)))],
        out_specs=pl.BlockSpec((8, 128), lambda i, j: (0, i)),
        compiler_params=pltpu.CompilerParams(
            dimension_semantics=("parallel", "arbitrary"),
            vmem_limit_bytes=48 * 1024 * 1024),
    )(packed)

    total = jnp.sum(partials)               # sum the per-core partials
    return total / n if size_average else total


if __name__ == "__main__":
    key = jax.random.PRNGKey(0)
    k1, k2 = jax.random.split(key)

    N, C = 16, 5                            # 16 samples, 5 classes
    preds = jax.random.normal(k1, (N, C), dtype=jnp.float32)
    labels = jax.random.randint(k2, (N,), 0, C, dtype=jnp.int32)

    loss = focal_loss(preds, labels, alpha=0.25, gamma=2, num_classes=C,
                      size_average=True)
    loss = jax.block_until_ready(loss)

    # Pure-JAX reference mirroring the PyTorch forward.
    alpha_vec = jnp.concatenate(
        [jnp.array([0.25], jnp.float32), jnp.full((C - 1,), 0.75, jnp.float32)])
    logp = jax.nn.log_softmax(preds, axis=1)
    p = jnp.exp(logp)
    pt = jnp.take_along_axis(p, labels[:, None], axis=1)[:, 0]
    lpt = jnp.take_along_axis(logp, labels[:, None], axis=1)[:, 0]
    at = alpha_vec[labels]
    ref = jnp.mean(at * (-(1.0 - pt) ** 2 * lpt))

    assert jnp.allclose(loss, ref, rtol=1e-5, atol=1e-5), (float(loss), float(ref))
    print("KERNEL_OK")
</pallas_src>

<mosaic_0001>
module attributes {stable_mosaic.version = 11 : i64} {
  func.func @_focal_loss_kernel(%arg0: i32, %arg1: i32, %arg2: memref<8x128xf32, #tpu.memory_space<vmem>>, %arg3: memref<8x128xf32, #tpu.memory_space<vmem>>) attributes {dimension_semantics = [#tpu.dimension_semantics<parallel>, #tpu.dimension_semantics<arbitrary>], iteration_bounds = array<i64: 1, 1>, scalar_prefetch = 0 : i64, scratch_operands = 0 : i64, tpu.core_type = #tpu.core_type<tc>, window_params = [{transform_indices = @transform_0, window_bounds = array<i64: 8, 128>}, {transform_indices = @transform_1, window_bounds = array<i64: 8, 128>}]} {
    %c0_i32 = arith.constant 0 : i32
    %0 = arith.cmpi eq, %arg1, %c0_i32 : i32
    %1 = arith.extui %0 : i1 to i32
    %c0_i32_0 = arith.constant 0 : i32
    %2 = arith.cmpi ne, %1, %c0_i32_0 : i32
    scf.if %2 {
      %cst_19 = arith.constant 0.000000e+00 : f32
      %62 = vector.broadcast %cst_19 : f32 to vector<8x128xf32>
      %c0_20 = arith.constant 0 : index
      %c0_21 = arith.constant 0 : index
      %63 = vector.load %arg3[%c0_20, %c0_21] : memref<8x128xf32, #tpu.memory_space<vmem>>, vector<8x128xf32>
      tpu.vector_store %arg3[%c0_20, %c0_21], %62 {strides = array<i32>} : memref<8x128xf32, #tpu.memory_space<vmem>>, vector<8x128xf32>,
    } else {
    }
    %c0 = arith.constant 0 : index
    %c0_1 = arith.constant 0 : index
    %3 = vector.load %arg2[%c0, %c0_1] : memref<8x128xf32, #tpu.memory_space<vmem>>, vector<8x128xf32>
    %4 = vector.extract_strided_slice %3 {offsets = [0, 0], sizes = [5, 128], strides = [1, 1]} : vector<8x128xf32> to vector<5x128xf32>
    %5 = vector.extract_strided_slice %3 {offsets = [5, 0], sizes = [1, 128], strides = [1, 1]} : vector<8x128xf32> to vector<1x128xf32>
    %6 = tpu.bitcast %5 : vector<1x128xf32> -> vector<1x128xi32>
    %cst = arith.constant dense<0xFF800000> : vector<128xf32>
    %7 = vector.multi_reduction <maximumf>, %4, %cst [0] : vector<5x128xf32> to vector<128xf32>
    %8 = vector.shape_cast %7 : vector<128xf32> to vector<1x128xf32>
    %9 = vector.broadcast %8 : vector<1x128xf32> to vector<5x128xf32>
    %10 = arith.subf %4, %9 : vector<5x128xf32>
    %11 = math.exp %10 : vector<5x128xf32>
    %cst_2 = arith.constant dense<0.000000e+00> : vector<128xf32>
    %12 = vector.multi_reduction <add>, %11, %cst_2 [0] : vector<5x128xf32> to vector<128xf32>
    %13 = vector.shape_cast %12 : vector<128xf32> to vector<1x128xf32>
    %14 = math.log %13 : vector<1x128xf32>
    %15 = tpu.iota {dimensions = array<i32: 0>} : vector<5x128xi32>
    %16 = vector.broadcast %6 : vector<1x128xi32> to vector<5x128xi32>
    %17 = arith.cmpi eq, %15, %16 : vector<5x128xi32>
    %cst_3 = arith.constant 0.000000e+00 : f32
    %18 = vector.broadcast %cst_3 : f32 to vector<5x128xf32>
    %19 = arith.select %17, %10, %18 : vector<5x128xi1>, vector<5x128xf32>
    %cst_4 = arith.constant dense<0.000000e+00> : vector<128xf32>
    %20 = vector.multi_reduction <add>, %19, %cst_4 [0] : vector<5x128xf32> to vector<128xf32>
    %21 = vector.shape_cast %20 : vector<128xf32> to vector<1x128xf32>
    %22 = arith.subf %21, %14 : vector<1x128xf32>
    %23 = math.exp %22 : vector<1x128xf32>
    %c0_i32_5 = arith.constant 0 : i32
    %24 = vector.broadcast %c0_i32_5 : i32 to vector<1x128xi32>
    %25 = arith.cmpi eq, %6, %24 : vector<1x128xi32>
    %cst_6 = arith.constant 2.500000e-01 : f32
    %cst_7 = arith.constant 7.500000e-01 : f32
    %26 = vector.broadcast %cst_6 : f32 to vector<1x128xf32>
    %27 = vector.broadcast %cst_7 : f32 to vector<1x128xf32>
    %28 = arith.select %25, %26, %27 : vector<1x128xi1>, vector<1x128xf32>
    %cst_8 = arith.constant 1.000000e+00 : f32
    %29 = vector.broadcast %cst_8 : f32 to vector<1x128xf32>
    %30 = arith.subf %29, %23 : vector<1x128xf32>
    %31 = arith.mulf %30, %30 : vector<1x128xf32>
    %cst_9 = arith.constant 0.000000e+00 : f32
    %32 = vector.broadcast %cst_9 : f32 to vector<1x128xf32>
    %33 = arith.subf %32, %22 : vector<1x128xf32>
    %34 = arith.mulf %31, %33 : vector<1x128xf32>
    %35 = arith.mulf %28, %34 : vector<1x128xf32>
    %c1_i32 = arith.constant 1 : i32
    %36 = arith.muli %arg0, %c1_i32 : i32
    %37 = arith.addi %36, %arg1 : i32
    %c128_i32 = arith.constant 128 : i32
    %38 = arith.muli %37, %c128_i32 : i32
    %39 = tpu.iota {dimensions = array<i32: 1>} : vector<1x128xi32>
    %40 = vector.broadcast %38 : i32 to vector<1x128xi32>
    %41 = arith.addi %40, %39 : vector<1x128xi32>
    %c16_i32 = arith.constant 16 : i32
    %42 = vector.broadcast %c16_i32 : i32 to vector<1x128xi32>
    %43 = arith.cmpi slt, %41, %42 : vector<1x128xi32>
    %cst_10 = arith.constant 0.000000e+00 : f32
    %44 = vector.broadcast %cst_10 : f32 to vector<1x128xf32>
    %45 = arith.select %43, %35, %44 : vector<1x128xi1>, vector<1x128xf32>
    %cst_11 = arith.constant dense<0.000000e+00> : vector<1xf32>
    %46 = vector.multi_reduction <add>, %45, %cst_11 [1] : vector<1x128xf32> to vector<1xf32>
    %47 = vector.shape_cast %46 : vector<1xf32> to vector<1x1xf32>
    %48 = tpu.iota {dimensions = array<i32: 0>} : vector<8x128xi32>
    %49 = tpu.iota {dimensions = array<i32: 1>} : vector<8x128xi32>
    %c0_12 = arith.constant 0 : index
    %c0_13 = arith.constant 0 : index
    %50 = vector.load %arg3[%c0_12, %c0_13] : memref<8x128xf32, #tpu.memory_space<vmem>>, vector<8x128xf32>
    %c0_i32_14 = arith.constant 0 : i32
    %51 = vector.broadcast %c0_i32_14 : i32 to vector<8x128xi32>
    %52 = arith.cmpi eq, %48, %51 : vector<8x128xi32>
    %c0_i32_15 = arith.constant 0 : i32
    %53 = vector.broadcast %c0_i32_15 : i32 to vector<8x128xi32>
    %54 = arith.cmpi eq, %49, %53 : vector<8x128xi32>
    %55 = arith.andi %52, %54 : vector<8x128xi1>
    %cst_16 = arith.constant 0.000000e+00 : f32
    %56 = vector.shape_cast %47 : vector<1x1xf32> to vector<1x1xf32>
    %57 = vector.broadcast %56 : vector<1x1xf32> to vector<8x128xf32>
    %58 = vector.broadcast %cst_16 : f32 to vector<8x128xf32>
    %59 = arith.select %55, %57, %58 : vector<8x128xi1>, vector<8x128xf32>
    %60 = arith.addf %50, %59 : vector<8x128xf32>
    %c0_17 = arith.constant 0 : index
    %c0_18 = arith.constant 0 : index
    %61 = vector.load %arg3[%c0_17, %c0_18] : memref<8x128xf32, #tpu.memory_space<vmem>>, vector<8x128xf32>
    tpu.vector_store %arg3[%c0_17, %c0_18], %60 {strides = array<i32>} : memref<8x128xf32, #tpu.memory_space<vmem>>, vector<8x128xf32>,
    return
  }
  func.func @transform_0(%arg0: i32, %arg1: i32) -> (i32, i32) {
    %c1_i32 = arith.constant 1 : i32
    %0 = arith.muli %arg0, %c1_i32 : i32
    %1 = arith.addi %0, %arg1 : i32
    %c0_i32 = arith.constant 0 : i32
    %2 = arith.minsi %1, %c0_i32 : i32
    %c0_i32_0 = arith.constant 0 : i32
    %c0_i32_1 = arith.constant 0 : i32
    return %c0_i32_0, %2 : i32, i32
  }
  func.func @transform_1(%arg0: i32, %arg1: i32) -> (i32, i32) {
    %c0_i32 = arith.constant 0 : i32
    %c0_i32_0 = arith.constant 0 : i32
    return %c0_i32, %arg0 : i32, i32
  }
}

</mosaic_0001>

<llo_original>
// kernel: tpu_custom_call.1
$region0: #{tpu_custom_call.1}
  #allocation0 [shape = 'u32[]', space=smem, size = 0x4, offset = 0x4, fixed_abs, tag = 'smem constant byte address 0x4 - core index']
  #allocation1 [shape = 'u32[144,128]{1,0:T(1,128)}', space=vmem, size = 0x12000, scoped, tag = 'internal scratch']
  %s0 = inlined_call_operand.hbm [shape: f32[8,128], index: 0, kind: input, shape index: {}]
  %s1 = inlined_call_operand.hbm [shape: f32[8,128], index: 1, kind: output, shape index: {}]
  %s2 = sld [smem:[#allocation0]]
  $region22: #{tpu_custom_call.1} parent=0
    _
  %s4 = ssub.s32 1, %s2
  %s5 = scalar_select 0, %s4, %s2
  $region1: #{tpu_custom_call.1} parent=0
    #allocation2 [shape = 'u8[4096]{0}', space=vmem, size = 0x1000, scoped, tag = 'input window, operand 0, single buffered']
    #allocation3 [shape = 's32[1]{0}', space=sflag, size = 0x4, scoped, tag = 'scoped memory for tpu_custom_call.1']
    #allocation4 [shape = 's32[1]{0}', space=sflag, size = 0x4, scoped, tag = 'scoped memory for tpu_custom_call.1']
    #allocation5 [shape = 'u8[4096]{0}', space=vmem, size = 0x1000, scoped, tag = 'output window, operand 0, single buffered']
    %6 = vsyncpa [#allocation3], 0
    %7 = vsyncpa [#allocation4], 0
    // Predicated region
    $region2: #{tpu_custom_call.1} parent=1 // pred_check
      _
    $region3: #{tpu_custom_call.1} parent=1 // pred_check_branch
      %9 = sbr.rel (0) target = $region5
    $region4: #{tpu_custom_call.1} parent=1 // pred_region
      %s10 = sadd.s32 0, 0
      %p11 = scmp.lt.s32.totalorder %s10, 0
      %s12 = scalar_select %p11, %s10, 0
      %s14 = ssub.s32 128, 128
      %15 = vsyncadd [#allocation3], %s14
      %s16 = smul.addr %s12, 128
      %s17 = scalar_lea.hbm %s0, %s16
      %s19 = sshll.u32 [#allocation2], 4
      %s20 = int_to_ptr.vmem [resolvable:$true] %s19
      %22 = dma.hbm_to_vmem [thread:$0]  %s17, 128, %s20, [#allocation3]
    $region5: #{tpu_custom_call.1} parent=1 // pred_fallthru
      _
    // Predicated region
    $region6: #{tpu_custom_call.1} parent=1 // pred_check
      _
    $region7: #{tpu_custom_call.1} parent=1 // pred_check_branch
      %24 = sbr.rel (0) target = $region9
    $region8: #{tpu_custom_call.1} parent=1 // pred_region
      %25 = dma.done [#allocation3], 128
    $region9: #{tpu_custom_call.1} parent=1 // pred_fallthru
      _
    %s26 = sadd.s32 0, 0
    %p27 = scmp.lt.s32.totalorder %s26, 0
    %s28 = scalar_select %p27, %s26, 0
    %p29 = scmp.eq.s32.totalorder 0, 0
    // Predicated region
    $region10: #{tpu_custom_call.1} parent=1 // pred_check
      %p30 = pneg %p29
    $region11: #{tpu_custom_call.1} parent=1 // pred_check_branch
      %32 = sbr.rel (%p30) target = $region13
    $region12: #{tpu_custom_call.1} parent=1 // pred_region
      %33 = vst [vmem:[#allocation5] sm:$0xff] 0.0
    $region13: #{tpu_custom_call.1} parent=1 // pred_fallthru
      _
    %v34 = vld [vmem:[#allocation2] sm:$0xff]
    %vm36 = vcmask 1044480
    %v37 = vsel %vm36, %v34, -inf
    %v38 = vrot.slane %v37, 4
    %v39 = vmax.f32 %v37, %v38
    %v40 = vrot.slane %v39, 2
    %v41 = vmax.f32 %v39, %v40
    %v42 = vrot.slane %v41, 1
    %v43 = vmax.f32 %v41, %v42
    %v44 = vsub.f32 %v34, %v43
    %v45 = vmul.f32 %v44, 1.442695
    %v46 = vpow.pop %v45
    %v47 = vsel %vm36, %v46, 0.0
    %v48 = vrot.slane %v47, 4
    %v49 = vadd.f32 %v47, %v48
    %v50 = vrot.slane %v49, 2
    %v51 = vadd.f32 %v49, %v50
    %v52 = vrot.slane %v51, 1
    %v53 = vadd.f32 %v51, %v52
    %v54 = vlog2.pop %v53
    %v55 = vmul.f32 %v54, 0.6931472
    %v56 = vlaneseq
    %v57 = vshrl.u32 %v56, 7
    %v58 = vlaneseq
    %v59 = vshrl.u32 %v58, 7
    %v60 = vsub.s32 5, %v59
    %v61 = vrot.slane %v34, %v60
    %vm62 = vcmp.eq.s32.totalorder %v57, %v61
    %v63 = vsel %vm62, %v44, 0.0
    %v64 = vsel %vm36, %v63, 0.0
    %v65 = vrot.slane %v64, 4
    %v66 = vadd.f32 %v64, %v65
    %v67 = vrot.slane %v66, 2
    %v68 = vadd.f32 %v66, %v67
    %v69 = vrot.slane %v68, 1
    %v70 = vadd.f32 %v68, %v69
    %v71 = vsub.f32 %v70, %v55
    %v72 = vmul.f32 %v71, 1.442695
    %v73 = vpow.pop %v72
    %vm74 = vcmp.eq.s32.totalorder %v34, 0
    %v75 = vsel %vm74, 0.25, 0.75
    %v76 = vsub.f32 1.0, %v73
    %v77 = vmul.f32 %v76, %v76
    %v78 = vsub.f32 0.0, %v71
    %v79 = vmul.f32 %v77, %v78
    %v80 = vmul.f32 %v75, %v79
    %s81 = sadd.s32 0, 0
    %s82 = smul.u32 %s81, 128
    %v83 = vlaneseq
    %v84 = vand.u32 %v83, 127
    %v85 = vstv %s82
    %v86 = vadd.s32 %v85, %v84
    %vm87 = vcmp.lt.s32.totalorder %v86, 16
    %v88 = vsel %vm87, %v80, 0.0
    %vm89 = vcmask 1045509
    %v90 = vsel %vm89, %v88, 0.0
    %91 = vadd.xlane.f32.xlu0 %v90
    %v92 = vpop.xlane.xlu0 %91
    %v93 = vld [vmem:[#allocation5] sm:$0xff]
    %vm94 = vcmp.eq.s32.totalorder %v57, 0
    %vm95 = vcmp.eq.s32.totalorder %v84, 0
    %vm96 = vmand %vm94, %vm95
    %v97 = vlaneseq
    %v98 = vshrl.u32 %v97, 7
    %v99 = vsub.s32 5, %v98
    %v100 = vrot.slane %v92, %v99
    %v101 = vsel %vm96, %v100, 0.0
    %v102 = vadd.f32 %v93, %v101
    %103 = vst [vmem:[#allocation5] sm:$0xff] %v102
    // Predicated region
    $region14: #{tpu_custom_call.1} parent=1 // pred_check
      _
    $region15: #{tpu_custom_call.1} parent=1 // pred_check_branch
      %105 = sbr.rel (0) target = $region17
    $region16: #{tpu_custom_call.1} parent=1 // pred_region
      %s107 = ssub.s32 128, 128
      %108 = vsyncadd [#allocation4], %s107
      %s110 = sshll.u32 [#allocation5], 4
      %s111 = int_to_ptr.vmem [resolvable:$true] %s110
      %113 = dma.vmem_to_hbm [thread:$0]  %s111, 128, %s1, [#allocation4]
    $region17: #{tpu_custom_call.1} parent=1 // pred_fallthru
      _
    // Predicated region
    $region18: #{tpu_custom_call.1} parent=1 // pred_check
      _
    $region19: #{tpu_custom_call.1} parent=1 // pred_check_branch
      %115 = sbr.rel (0) target = $region21
    $region20: #{tpu_custom_call.1} parent=1 // pred_region
      %116 = dma.done [#allocation4], 128
    $region21: #{tpu_custom_call.1} parent=1 // pred_fallthru
      _
    %117 = vsyncpa [#allocation3], 1
    %118 = vsyncpa [#allocation4], 1

</llo_original>
